<compile_context>
chip_gen: v5e
topology: v5e:2x2
jax: 0.10.0
libtpu: 0.0.40
codegen_flags: <defaults>
</compile_context>

<pallas_src>
import functools

import jax
import jax.numpy as jnp
from jax.experimental import pallas as pl
from jax.experimental.pallas import tpu as pltpu


def psn_kernel(x_ref, w_ref, b_ref, o_ref):
    # x_ref: [TBp, P*I]  packed batch tile (P samples per row, features dense on lanes)
    # w_ref: [H*P, P*I]  block-diagonal W, hidden index outermost on sublanes (resident)
    # b_ref: [H*P, 1]    bias replicated per packed slot (resident)
    # o_ref: [P,   TBp]  lane-dense output: o[p, t] = sample P*t + p
    #
    # h[hh*P + p, t] = (x[P*t + p] @ W^T)[hh] + b[hh]
    h = jax.lax.dot_general(
        w_ref[...], x_ref[...],
        dimension_numbers=(((1,), (1,)), ((), ())),
        preferred_element_type=jnp.float32,
    ) + b_ref[...]                                   # [H*P, TBp]

    P = o_ref.shape[0]
    n = h.shape[0] // P                              # = H (static)

    # Pairwise tree product over the hidden axis: at each step multiply the top
    # half of each sublane group into the bottom half (contiguous 2-D slices,
    # dependency depth ceil(log2 H) instead of H-1 serial multiplies).
    cur = h
    carry = None
    while n > 1:
        if n % 2 == 1:
            last = cur[(n - 1) * P:n * P, :]
            carry = last if carry is None else carry * last
            n -= 1
        half = n // 2
        cur = cur[:half * P, :] * cur[half * P:n * P, :]
        n = half
    if carry is not None:
        cur = cur * carry                            # [P, TBp]

    o_ref[...] = jax.nn.sigmoid(cur).astype(o_ref.dtype)


@functools.partial(jax.jit, static_argnames=("tb",))
def psn_forward(x, w, b, *, tb=32768):
    """x: [B, I] f32, w: [H, I] f32 (torch Linear layout), b: [H] f32 -> [B] f32."""
    B, I = x.shape
    H = w.shape[0]

    # Packing factor: how many samples fit side-by-side in the 128-lane vreg.
    P = 128 // I if (I <= 128 and 128 % I == 0) else 1
    align = P * 128                       # batch rows per lane-aligned packed block

    # --- batch tile selection (HBM-bound => big tiles) ---------------------
    tb = max(align, (min(int(tb), 1 << 20) // align) * align)
    # Keep >=2 grid steps for large B so v7x's 2 TensorCores both get work.
    tb = min(tb, max(align, pl.cdiv(B, 2 * align) * align))
    n_tiles = pl.cdiv(max(B, 1), tb)
    # Rebalance the tile so the last tile carries minimal zero-padding.
    tb = pl.cdiv(pl.cdiv(B, n_tiles), align) * align
    b_pad = n_tiles * tb
    if b_pad != B:
        x = jnp.pad(x, ((0, b_pad - B), (0, 0)))     # padded rows are discarded below

    Bp = b_pad // P                       # packed batch length (output lane dim)
    TBp = tb // P                         # packed rows per tile (multiple of 128)
    x_packed = x.reshape(Bp, P * I)       # contiguous row-major reshape: free

    if P > 1:
        # Block-diagonal W with hidden index outermost on the sublane axis:
        # w_big[hh*P + p, q*I + i] = (p == q) * w[hh, i]
        eye = jnp.eye(P, dtype=w.dtype)
        w_big = jnp.einsum("hi,pq->hpqi", w, eye).reshape(H * P, P * I)
    else:
        w_big = w
    b_big = jnp.repeat(b, P).reshape(H * P, 1)       # b_big[hh*P + p] = b[hh]

    # Advisory cost hint: the call is memory-bound (x read dominates).
    flops = 2 * b_pad * I * H + b_pad * H
    bytes_accessed = 4 * (b_pad * I + H * P * (P * I + 1) + b_pad)

    out = pl.pallas_call(
        psn_kernel,
        out_shape=jax.ShapeDtypeStruct((P, Bp), jnp.float32),
        grid=(n_tiles,),
        in_specs=[
            pl.BlockSpec((TBp, P * I), lambda i: (i, 0)),    # x: tiled over packed batch
            pl.BlockSpec((H * P, P * I), lambda i: (0, 0)),  # W_big: VMEM-resident
            pl.BlockSpec((H * P, 1), lambda i: (0, 0)),      # bias:  VMEM-resident
        ],
        out_specs=pl.BlockSpec((P, TBp), lambda i: (0, i)),  # lane-dense output slab
        compiler_params=pltpu.CompilerParams(
            dimension_semantics=("parallel",)),
        # Per-tile VMEM (double-buffered x ~8 MiB at the default tb) stays well
        # under the 32 MiB default scoped limit on v5e/v6e/v7x, so no
        # vmem_limit_bytes override is needed.
        cost_estimate=pl.CostEstimate(
            flops=flops, transcendentals=b_pad, bytes_accessed=bytes_accessed),
    )(x_packed, w_big, b_big)

    # Undo the lane packing: out[p, t] is sample P*t + p -> transpose + flatten.
    return out.T.reshape(b_pad)[:B]


if __name__ == "__main__":
    # Small shapes consistent with the module: batch=8, input_size=32, hidden_size=8.
    B, INPUT, HIDDEN, OUTPUT = 8, 32, 8, 1   # output_size is unused by forward()

    key = jax.random.PRNGKey(0)
    kx, kw, kb, kx2, kx3 = jax.random.split(key, 5)

    x = jax.random.normal(kx, (B, INPUT), dtype=jnp.float32)

    # Deterministic parameter init mimicking torch.nn.Linear default:
    # U(-1/sqrt(fan_in), 1/sqrt(fan_in))
    bound = 1.0 / (INPUT ** 0.5)
    w = jax.random.uniform(kw, (HIDDEN, INPUT), minval=-bound, maxval=bound,
                           dtype=jnp.float32)
    b = jax.random.uniform(kb, (HIDDEN,), minval=-bound, maxval=bound,
                           dtype=jnp.float32)

    def ref(xx):
        # Pure-JAX reference (same math as the PyTorch module).
        return jax.nn.sigmoid(jnp.prod(xx @ w.T + b, axis=1))

    # Tiny batch: single grid tile after packing/padding.
    y = psn_forward(x, w, b)
    jax.block_until_ready(y)
    assert y.shape == (B,)
    assert jnp.allclose(y, ref(x), atol=1e-5, rtol=1e-5), "mismatch vs reference (B=8)"

    # Batch not a multiple of the packing factor or tile -> exercises grid + padding.
    B2 = 700
    x2 = jax.random.normal(kx2, (B2, INPUT), dtype=jnp.float32)
    y2 = psn_forward(x2, w, b)
    jax.block_until_ready(y2)
    assert y2.shape == (B2,)
    assert jnp.allclose(y2, ref(x2), atol=1e-5, rtol=1e-5), "mismatch vs reference (B=700)"

    # Larger batch: exercises the >=2-grid-step cap and tile rebalancing.
    B3 = 5000
    x3 = jax.random.normal(kx3, (B3, INPUT), dtype=jnp.float32)
    y3 = psn_forward(x3, w, b)
    jax.block_until_ready(y3)
    assert y3.shape == (B3,)
    assert jnp.allclose(y3, ref(x3), atol=1e-5, rtol=1e-5), "mismatch vs reference (B=5000)"

    print("KERNEL_OK")
</pallas_src>

<mosaic_0001>
module attributes {stable_mosaic.version = 11 : i64} {
  func.func @psn_kernel(%arg0: i32, %arg1: memref<128x128xf32, #tpu.memory_space<vmem>>, %arg2: memref<32x128xf32, #tpu.memory_space<vmem>>, %arg3: memref<32x1xf32, #tpu.memory_space<vmem>>, %arg4: memref<4x128xf32, #tpu.memory_space<vmem>>) attributes {dimension_semantics = [#tpu.dimension_semantics<parallel>], iteration_bounds = array<i64: 1>, scalar_prefetch = 0 : i64, scratch_operands = 0 : i64, tpu.core_type = #tpu.core_type<tc>, window_params = [{transform_indices = @transform_0, window_bounds = array<i64: 128, 128>}, {pipeline_mode = #tpu.pipeline_mode<synchronous>, transform_indices = @transform_1, window_bounds = array<i64: 32, 128>}, {pipeline_mode = #tpu.pipeline_mode<synchronous>, transform_indices = @transform_2, window_bounds = array<i64: 32, 1>}, {transform_indices = @transform_3, window_bounds = array<i64: 4, 128>}]} {
    %c0 = arith.constant 0 : index
    %c0_0 = arith.constant 0 : index
    %0 = vector.load %arg2[%c0, %c0_0] : memref<32x128xf32, #tpu.memory_space<vmem>>, vector<32x128xf32>
    %c0_1 = arith.constant 0 : index
    %c0_2 = arith.constant 0 : index
    %1 = vector.load %arg1[%c0_1, %c0_2] : memref<128x128xf32, #tpu.memory_space<vmem>>, vector<128x128xf32>
    %cst = arith.constant dense<0.000000e+00> : vector<32x128xf32>
    %2 = tpu.matmul %0, %1, %cst {dimension_numbers = #tpu.dot_dimension_numbers<[1], [1], [0], [0], [0, 0, 1, 0], [], []>} : vector<32x128xf32>, vector<128x128xf32>, vector<32x128xf32> -> vector<32x128xf32>
    %c0_3 = arith.constant 0 : index
    %c0_4 = arith.constant 0 : index
    %3 = vector.load %arg3[%c0_3, %c0_4] : memref<32x1xf32, #tpu.memory_space<vmem>>, vector<32x1xf32>
    %4 = vector.broadcast %3 : vector<32x1xf32> to vector<32x128xf32>
    %5 = arith.addf %2, %4 : vector<32x128xf32>
    %6 = vector.extract_strided_slice %5 {offsets = [0, 0], sizes = [16, 128], strides = [1, 1]} : vector<32x128xf32> to vector<16x128xf32>
    %7 = vector.extract_strided_slice %5 {offsets = [16, 0], sizes = [16, 128], strides = [1, 1]} : vector<32x128xf32> to vector<16x128xf32>
    %8 = arith.mulf %6, %7 : vector<16x128xf32>
    %9 = vector.extract_strided_slice %8 {offsets = [0, 0], sizes = [8, 128], strides = [1, 1]} : vector<16x128xf32> to vector<8x128xf32>
    %10 = vector.extract_strided_slice %8 {offsets = [8, 0], sizes = [8, 128], strides = [1, 1]} : vector<16x128xf32> to vector<8x128xf32>
    %11 = arith.mulf %9, %10 : vector<8x128xf32>
    %12 = vector.extract_strided_slice %11 {offsets = [0, 0], sizes = [4, 128], strides = [1, 1]} : vector<8x128xf32> to vector<4x128xf32>
    %13 = vector.extract_strided_slice %11 {offsets = [4, 0], sizes = [4, 128], strides = [1, 1]} : vector<8x128xf32> to vector<4x128xf32>
    %14 = arith.mulf %12, %13 : vector<4x128xf32>
    %15 = arith.negf %14 : vector<4x128xf32>
    %16 = math.exp %15 : vector<4x128xf32>
    %cst_5 = arith.constant 1.000000e+00 : f32
    %17 = vector.broadcast %cst_5 : f32 to vector<4x128xf32>
    %18 = arith.addf %17, %16 : vector<4x128xf32>
    %19 = arith.divf %17, %18 : vector<4x128xf32>
    %c0_6 = arith.constant 0 : index
    %c0_7 = arith.constant 0 : index
    %20 = vector.load %arg4[%c0_6, %c0_7] : memref<4x128xf32, #tpu.memory_space<vmem>>, vector<4x128xf32>
    tpu.vector_store %arg4[%c0_6, %c0_7], %19 {strides = array<i32>} : memref<4x128xf32, #tpu.memory_space<vmem>>, vector<4x128xf32>,
    return
  }
  func.func @transform_0(%arg0: i32) -> (i32, i32) {
    %c0_i32 = arith.constant 0 : i32
    %c0_i32_0 = arith.constant 0 : i32
    return %arg0, %c0_i32 : i32, i32
  }
  func.func @transform_1(%arg0: i32) -> (i32, i32) {
    %c0_i32 = arith.constant 0 : i32
    %c0_i32_0 = arith.constant 0 : i32
    %c0_i32_1 = arith.constant 0 : i32
    return %c0_i32, %c0_i32_0 : i32, i32
  }
  func.func @transform_2(%arg0: i32) -> (i32, i32) {
    %c0_i32 = arith.constant 0 : i32
    %c0_i32_0 = arith.constant 0 : i32
    %c0_i32_1 = arith.constant 0 : i32
    return %c0_i32, %c0_i32_0 : i32, i32
  }
  func.func @transform_3(%arg0: i32) -> (i32, i32) {
    %c0_i32 = arith.constant 0 : i32
    %c0_i32_0 = arith.constant 0 : i32
    return %c0_i32, %arg0 : i32, i32
  }
}

</mosaic_0001>

<llo_original>
// kernel: psn_forward.1
$region0: #{psn_forward.1}
  #allocation0 [shape = 'u32[]', space=smem, size = 0x4, offset = 0x4, fixed_abs, tag = 'smem constant byte address 0x4 - core index']
  #allocation1 [shape = 'u32[72,128]{1,0:T(1,128)}', space=vmem, size = 0x9000, scoped, tag = 'internal scratch']
  %s0 = inlined_call_operand.vmem [shape: f32[128,128], index: 0, kind: input, shape index: {}]
  %s1 = inlined_call_operand.vmem [shape: f32[32,128], index: 1, kind: input, shape index: {}]
  %s2 = inlined_call_operand.vmem [shape: f32[32,1], index: 2, kind: input, shape index: {}]
  %s3 = inlined_call_operand.vmem [shape: f32[4,128], index: 3, kind: output, shape index: {}]
  %s4 = sld [smem:[#allocation0]]
  $region22: #{psn_forward.1} parent=0
    _
  %s6 = ssub.s32 1, %s4
  %s7 = scalar_select 0, %s6, %s4
  // Predicated region
  $region2: #{psn_forward.1} parent=0 // pred_check
    _
  $region3: #{psn_forward.1} parent=0 // pred_check_branch
    %9 = sbr.rel (0) target = $region5
  $region4: #{psn_forward.1} parent=0 // pred_region
    _
  $region5: #{psn_forward.1} parent=0 // pred_fallthru
    _
  // Predicated region
  $region6: #{psn_forward.1} parent=0 // pred_check
    _
  $region7: #{psn_forward.1} parent=0 // pred_check_branch
    %11 = sbr.rel (0) target = $region9
  $region8: #{psn_forward.1} parent=0 // pred_region
    _
  $region9: #{psn_forward.1} parent=0 // pred_fallthru
    _
  // Predicated region
  $region10: #{psn_forward.1} parent=0 // pred_check
    _
  $region11: #{psn_forward.1} parent=0 // pred_check_branch
    %13 = sbr.rel (0) target = $region13
  $region12: #{psn_forward.1} parent=0 // pred_region
    _
  $region13: #{psn_forward.1} parent=0 // pred_fallthru
    _
  %v14 = vld [vmem:[%s1] sm:$0xff]
  %v15 = vld [vmem:[%s1 + $0x8] sm:$0xff]
  %v16 = vld [vmem:[%s1 + $0x10] sm:$0xff]
  %v17 = vld [vmem:[%s1 + $0x18] sm:$0xff]
  %v18 = vld [vmem:[%s0] sm:$0xff]
  %v19 = vld [vmem:[%s0 + $0x8] sm:$0xff]
  %v20 = vld [vmem:[%s0 + $0x10] sm:$0xff]
  %v21 = vld [vmem:[%s0 + $0x18] sm:$0xff]
  %v22 = vld [vmem:[%s0 + $0x20] sm:$0xff]
  %v23 = vld [vmem:[%s0 + $0x28] sm:$0xff]
  %v24 = vld [vmem:[%s0 + $0x30] sm:$0xff]
  %v25 = vld [vmem:[%s0 + $0x38] sm:$0xff]
  %v26 = vld [vmem:[%s0 + $0x40] sm:$0xff]
  %v27 = vld [vmem:[%s0 + $0x48] sm:$0xff]
  %v28 = vld [vmem:[%s0 + $0x50] sm:$0xff]
  %v29 = vld [vmem:[%s0 + $0x58] sm:$0xff]
  %v30 = vld [vmem:[%s0 + $0x60] sm:$0xff]
  %v31 = vld [vmem:[%s0 + $0x68] sm:$0xff]
  %v32 = vld [vmem:[%s0 + $0x70] sm:$0xff]
  %v33 = vld [vmem:[%s0 + $0x78] sm:$0xff]
  %v34 = vld [vmem:[%s2] sm:$0xff]
  %v35 = vld [vmem:[%s2 + $0x8] sm:$0xff]
  %v36 = vld [vmem:[%s2 + $0x10] sm:$0xff]
  %v37 = vld [vmem:[%s2 + $0x18] sm:$0xff]
  %39 = vset.pattern.permute.xlu0 0
  %40 = vperm.xlu0 %39, %v34
  %v41 = vpop.permute.xlu0 %40
  %44 = vset.pattern.permute.xlu0 0
  %45 = vperm.xlu0 %44, %v35
  %v46 = vpop.permute.xlu0 %45
  %49 = vset.pattern.permute.xlu0 0
  %50 = vperm.xlu0 %49, %v36
  %v51 = vpop.permute.xlu0 %50
  %54 = vset.pattern.permute.xlu0 0
  %55 = vperm.xlu0 %54, %v37
  %v56 = vpop.permute.xlu0 %55
  %58 = vmatpush.xpose.msra.mxu0 %v33
  %59 = vmatpush.xpose.msra.mxu0 %v32
  %60 = vmatpush.xpose.msra.mxu0 %v31
  %61 = vmatpush.xpose.msra.mxu0 %v30
  %62 = vmatpush.xpose.msra.mxu0 %v29
  %63 = vmatpush.xpose.msra.mxu0 %v28
  %64 = vmatpush.xpose.msra.mxu0 %v27
  %65 = vmatpush.xpose.msra.mxu0 %v26
  %66 = vmatpush.xpose.msra.mxu0 %v25
  %67 = vmatpush.xpose.msra.mxu0 %v24
  %68 = vmatpush.xpose.msra.mxu0 %v23
  %69 = vmatpush.xpose.msra.mxu0 %v22
  %70 = vmatpush.xpose.msra.mxu0 %v21
  %71 = vmatpush.xpose.msra.mxu0 %v20
  %72 = vmatpush.xpose.msra.mxu0 %v19
  %73 = vmatpush.xpose.msra.mxu0 %v18
  %74 = vmatmul.f32.gmra.mxu0 %v14
  %v75 = vpop.f32.mrf.mxu0
  %v76 = vadd.f32 %v41, %v75
  %77 = vmatmul.f32.gmra.mxu0 %v15
  %v78 = vpop.f32.mrf.mxu0
  %v79 = vadd.f32 %v46, %v78
  %80 = vmatmul.f32.gmra.mxu0 %v16
  %v81 = vpop.f32.mrf.mxu0
  %v82 = vadd.f32 %v51, %v81
  %83 = vmatmul.f32.gmra.mxu0 %v17
  %v84 = vpop.f32.mrf.mxu0
  %v85 = vadd.f32 %v56, %v84
  %86 = vdwg.mxu0
  %v87 = vmul.f32 %v76, %v82
  %v88 = vmul.f32 %v79, %v85
  %v89 = vmul.f32 %v87, %v88
  %v91 = vrot.slane %v89, 4
  %v93 = vmul.f32 %v89, %v91
  %v94 = vxor.u32 %v93, 2147483648
  %v95 = vmul.f32 %v94, 1.442695
  %v96 = vpow.pop %v95
  %v97 = vadd.f32 %v96, 1.0
  %v98 = vrcp.pop %v97
  %v99 = vmul.f32 %v97, %v98
  %v100 = vsub.f32 1.0, %v99
  %v101 = vmul.f32 %v98, %v100
  %v102 = vadd.f32 %v98, %v101
  %vm103 = vweird.f32 %v97
  %vm104 = vweird.f32 %v98
  %vm105 = vmor %vm103, %vm104
  %v106 = vsel %vm105, %v98, %v102
  %v107 = vand.u32 2147483647, %v97
  %vm108 = vcmp.eq.f32.partialorder %v107, 8.507059e+37
  %v109 = vand.u32 %v97, 2147483648
  %v110 = vor.u32 1.1754944e-38, %v109
  %v111 = vsel %vm108, %v110, %v106
  %v112 = vmul.f32 1.0, %v111
  %113 = vst [vmem:[%s3] sm:$0xf] %v112
  // Predicated region
  $region14: #{psn_forward.1} parent=0 // pred_check
    _
  $region15: #{psn_forward.1} parent=0 // pred_check_branch
    %115 = sbr.rel (0) target = $region17
  $region16: #{psn_forward.1} parent=0 // pred_region
    _
  $region17: #{psn_forward.1} parent=0 // pred_fallthru
    _
  // Predicated region
  $region18: #{psn_forward.1} parent=0 // pred_check
    _
  $region19: #{psn_forward.1} parent=0 // pred_check_branch
    %117 = sbr.rel (0) target = $region21
  $region20: #{psn_forward.1} parent=0 // pred_region
    _
  $region21: #{psn_forward.1} parent=0 // pred_fallthru
    _

</llo_original>
